<compile_context>
chip_gen: v7x
topology: tpu7x:2x2x1
jax: 0.10.0
libtpu: 0.0.40
codegen_flags: <defaults>
</compile_context>

<pallas_src>
import functools

import jax
import jax.numpy as jnp
from jax.experimental import pallas as pl
from jax.experimental.pallas import tpu as pltpu


def _add_noise_kernel(x_ref, n_ref, o_ref, *, scale):
    # Accumulate in f32, single downcast at the end.
    x = x_ref[...].astype(jnp.float32)
    o_ref[...] = (x + jnp.float32(scale) * n_ref[...]).astype(o_ref.dtype)


def _pick_lane(n):
    """Largest lane width (multiple of 128) dividing n; (128, pad) fallback."""
    for lane in (1024, 512, 256, 128):
        if n % lane == 0:
            return lane, False
    return 128, True


def add_noise(x, scale, key):
    """x + scale * N(0,1), elementwise, via a row-tiled Pallas TPU kernel."""
    orig_shape = x.shape
    n = x.size
    lane, needs_pad = _pick_lane(n)
    rows = pl.cdiv(n, lane)

    x_flat = x.reshape(-1)
    if needs_pad:
        x_flat = jnp.pad(x_flat, (0, rows * lane - n))
    x2d = x_flat.reshape(rows, lane)

    # iid N(0,1) noise generated directly at the 2-D slab shape (same
    # distribution as torch.randn(x.shape)).
    noise2d = jax.random.normal(key, (rows, lane), dtype=jnp.float32)

    # ~2 MiB f32 blocks, row count a multiple of 8 for (8,128) tiling.
    # Small inputs collapse to a single full-extent block (always legal).
    target_rows = max(8, ((512 * 1024) // lane) // 8 * 8)
    tile_rows = rows if rows <= target_rows else target_rows
    grid = (pl.cdiv(rows, tile_rows),)

    out2d = pl.pallas_call(
        functools.partial(_add_noise_kernel, scale=float(scale)),
        out_shape=jax.ShapeDtypeStruct((rows, lane), x.dtype),
        grid=grid,
        in_specs=[
            pl.BlockSpec((tile_rows, lane), lambda i: (i, 0)),
            pl.BlockSpec((tile_rows, lane), lambda i: (i, 0)),
        ],
        out_specs=pl.BlockSpec((tile_rows, lane), lambda i: (i, 0)),
        compiler_params=pltpu.CompilerParams(
            dimension_semantics=("parallel",),        # megacore sharding on v7x
            vmem_limit_bytes=32 * 1024 * 1024,        # safe on v7x's 64 MiB VMEM
        ),
    )(x2d, noise2d)

    if needs_pad:
        return out2d.reshape(-1)[:n].reshape(orig_shape)
    return out2d.reshape(orig_shape)


if __name__ == "__main__":
    key = jax.random.PRNGKey(0)
    k_x, k_noise = jax.random.split(key)

    # Small NCHW conv-style activation, as the PyTorch module would see.
    x = jax.random.normal(k_x, (2, 4, 16, 16), dtype=jnp.float32)
    scale = 0.1

    y = add_noise(x, scale, k_noise)
    y = jax.block_until_ready(y)

    assert y.shape == x.shape and y.dtype == x.dtype

    # Pure-JAX reference using the identical noise stream.
    n = x.size
    lane, needs_pad = _pick_lane(n)
    rows = pl.cdiv(n, lane)
    noise_ref = jax.random.normal(k_noise, (rows, lane), dtype=jnp.float32)
    noise_ref = noise_ref.reshape(-1)[:n].reshape(x.shape)
    y_ref = x + jnp.float32(scale) * noise_ref
    assert jnp.allclose(y, y_ref, atol=1e-6, rtol=1e-6)

    # Sanity: noise was actually added, and stays small (~scale * few sigma).
    diff = jnp.abs(y - x)
    assert float(jnp.max(diff)) > 0.0
    assert float(jnp.max(diff)) < 1.0

    print("KERNEL_OK")
</pallas_src>

<mosaic_0001>
module attributes {stable_mosaic.version = 11 : i64} {
  func.func @_add_noise_kernel(%arg0: i32, %arg1: memref<2x1024xf32, #tpu.memory_space<vmem>>, %arg2: memref<2x1024xf32, #tpu.memory_space<vmem>>, %arg3: memref<2x1024xf32, #tpu.memory_space<vmem>>) attributes {dimension_semantics = [#tpu.dimension_semantics<parallel>], iteration_bounds = array<i64: 1>, scalar_prefetch = 0 : i64, scratch_operands = 0 : i64, tpu.core_type = #tpu.core_type<tc>, window_params = [{transform_indices = @transform_0, window_bounds = array<i64: 2, 1024>}, {transform_indices = @transform_1, window_bounds = array<i64: 2, 1024>}, {transform_indices = @transform_2, window_bounds = array<i64: 2, 1024>}]} {
    %c0 = arith.constant 0 : index
    %c0_0 = arith.constant 0 : index
    %0 = vector.load %arg1[%c0, %c0_0] : memref<2x1024xf32, #tpu.memory_space<vmem>>, vector<2x1024xf32>
    %c0_1 = arith.constant 0 : index
    %c0_2 = arith.constant 0 : index
    %1 = vector.load %arg2[%c0_1, %c0_2] : memref<2x1024xf32, #tpu.memory_space<vmem>>, vector<2x1024xf32>
    %cst = arith.constant 1.000000e-01 : f32
    %2 = vector.broadcast %cst : f32 to vector<2x1024xf32>
    %3 = arith.mulf %2, %1 : vector<2x1024xf32>
    %4 = arith.addf %0, %3 : vector<2x1024xf32>
    %c0_3 = arith.constant 0 : index
    %c0_4 = arith.constant 0 : index
    %5 = vector.load %arg3[%c0_3, %c0_4] : memref<2x1024xf32, #tpu.memory_space<vmem>>, vector<2x1024xf32>
    tpu.vector_store %arg3[%c0_3, %c0_4], %4 {strides = array<i32>} : memref<2x1024xf32, #tpu.memory_space<vmem>>, vector<2x1024xf32>,
    return
  }
  func.func @transform_0(%arg0: i32) -> (i32, i32) {
    %c0_i32 = arith.constant 0 : i32
    %c0_i32_0 = arith.constant 0 : i32
    return %arg0, %c0_i32 : i32, i32
  }
  func.func @transform_1(%arg0: i32) -> (i32, i32) {
    %c0_i32 = arith.constant 0 : i32
    %c0_i32_0 = arith.constant 0 : i32
    return %arg0, %c0_i32 : i32, i32
  }
  func.func @transform_2(%arg0: i32) -> (i32, i32) {
    %c0_i32 = arith.constant 0 : i32
    %c0_i32_0 = arith.constant 0 : i32
    return %arg0, %c0_i32 : i32, i32
  }
}

</mosaic_0001>

<llo_original>
// kernel: tpu_custom_call.1
$region0: #{tpu_custom_call.1}
  #allocation0 [shape = 'u32[]', space=smem, size = 0x4, offset = 0x4, fixed_abs, tag = 'smem constant byte address 0x4 - core index']
  #allocation1 [shape = 'u32[144,128]{1,0:T(1,128)}', space=vmem, size = 0x12000, scoped, tag = 'internal scratch']
  %s0 = inlined_call_operand.hbm [shape: f32[2,1024], index: 0, kind: input, shape index: {}]
  %s1 = inlined_call_operand.hbm [shape: f32[2,1024], index: 1, kind: input, shape index: {}]
  %s2 = inlined_call_operand.hbm [shape: f32[2,1024], index: 2, kind: output, shape index: {}]
  %s3 = sld [smem:[#allocation0]]
  $region26: #{tpu_custom_call.1} parent=0
    _
  %s5 = ssub.s32 1, %s3
  %s6 = scalar_select 0, %s5, %s3
  $region1: #{tpu_custom_call.1} parent=0
    #allocation2 [shape = 'u8[8192]{0}', space=vmem, size = 0x2000, scoped, tag = 'input window, operand 0, single buffered']
    #allocation3 [shape = 's32[1]{0}', space=sflag, size = 0x4, scoped, tag = 'scoped memory for tpu_custom_call.1']
    #allocation4 [shape = 's32[1]{0}', space=sflag, size = 0x4, scoped, tag = 'scoped memory for tpu_custom_call.1']
    #allocation5 [shape = 'u8[8192]{0}', space=vmem, size = 0x2000, scoped, tag = 'input window, operand 1, single buffered']
    #allocation6 [shape = 's32[1]{0}', space=sflag, size = 0x4, scoped, tag = 'scoped memory for tpu_custom_call.1']
    #allocation7 [shape = 'u8[8192]{0}', space=vmem, size = 0x2000, scoped, tag = 'output window, operand 0, single buffered']
    %7 = vsyncpa [#allocation3], 0
    %8 = vsyncpa [#allocation6], 0
    %9 = vsyncpa [#allocation4], 0
    // Predicated region
    $region2: #{tpu_custom_call.1} parent=1 // pred_check
      _
    $region3: #{tpu_custom_call.1} parent=1 // pred_check_branch
      %11 = sbr.rel (0) target = $region5
    $region4: #{tpu_custom_call.1} parent=1 // pred_region
      %s13 = ssub.s32 256, 256
      %14 = vsyncadd [#allocation3], %s13
      %s16 = sshll.u32 [#allocation2], 4
      %s17 = int_to_ptr.vmem [resolvable:$true] %s16
      %19 = dma.hbm_to_vmem [thread:$0]  %s0, 256, %s17, [#allocation3]
    $region5: #{tpu_custom_call.1} parent=1 // pred_fallthru
      _
    // Predicated region
    $region6: #{tpu_custom_call.1} parent=1 // pred_check
      _
    $region7: #{tpu_custom_call.1} parent=1 // pred_check_branch
      %21 = sbr.rel (0) target = $region9
    $region8: #{tpu_custom_call.1} parent=1 // pred_region
      %s23 = ssub.s32 256, 256
      %24 = vsyncadd [#allocation6], %s23
      %s26 = sshll.u32 [#allocation5], 4
      %s27 = int_to_ptr.vmem [resolvable:$true] %s26
      %29 = dma.hbm_to_vmem [thread:$0]  %s1, 256, %s27, [#allocation6]
    $region9: #{tpu_custom_call.1} parent=1 // pred_fallthru
      _
    // Predicated region
    $region10: #{tpu_custom_call.1} parent=1 // pred_check
      _
    $region11: #{tpu_custom_call.1} parent=1 // pred_check_branch
      %31 = sbr.rel (0) target = $region13
    $region12: #{tpu_custom_call.1} parent=1 // pred_region
      %32 = dma.done [#allocation3], 256
    $region13: #{tpu_custom_call.1} parent=1 // pred_fallthru
      _
    // Predicated region
    $region14: #{tpu_custom_call.1} parent=1 // pred_check
      _
    $region15: #{tpu_custom_call.1} parent=1 // pred_check_branch
      %34 = sbr.rel (0) target = $region17
    $region16: #{tpu_custom_call.1} parent=1 // pred_region
      %35 = dma.done [#allocation6], 256
    $region17: #{tpu_custom_call.1} parent=1 // pred_fallthru
      _
    %v36 = vld [vmem:[#allocation2] sm:$0xff]
    %v37 = vld [vmem:[#allocation2 + $0x8] sm:$0xff]
    %v38 = vld [vmem:[#allocation5] sm:$0xff]
    %v39 = vld [vmem:[#allocation5 + $0x8] sm:$0xff]
    %v40 = vmul.f32 %v38, 0.1
    %v41 = vmul.f32 %v39, 0.1
    %v42 = vadd.f32 %v36, %v40
    %v43 = vadd.f32 %v37, %v41
    %44 = vst [vmem:[#allocation7] sm:$0xff] %v42
    %45 = vst [vmem:[#allocation7 + $0x8] sm:$0xff] %v43
    // Predicated region
    $region18: #{tpu_custom_call.1} parent=1 // pred_check
      _
    $region19: #{tpu_custom_call.1} parent=1 // pred_check_branch
      %47 = sbr.rel (0) target = $region21
    $region20: #{tpu_custom_call.1} parent=1 // pred_region
      %s49 = ssub.s32 256, 256
      %50 = vsyncadd [#allocation4], %s49
      %s52 = sshll.u32 [#allocation7], 4
      %s53 = int_to_ptr.vmem [resolvable:$true] %s52
      %55 = dma.vmem_to_hbm [thread:$0]  %s53, 256, %s2, [#allocation4]
    $region21: #{tpu_custom_call.1} parent=1 // pred_fallthru
      _
    // Predicated region
    $region22: #{tpu_custom_call.1} parent=1 // pred_check
      _
    $region23: #{tpu_custom_call.1} parent=1 // pred_check_branch
      %57 = sbr.rel (0) target = $region25
    $region24: #{tpu_custom_call.1} parent=1 // pred_region
      %58 = dma.done [#allocation4], 256
    $region25: #{tpu_custom_call.1} parent=1 // pred_fallthru
      _
    %59 = vsyncpa [#allocation3], 1
    %60 = vsyncpa [#allocation6], 1
    %61 = vsyncpa [#allocation4], 1

</llo_original>
